<compile_context>
chip_gen: v6e
topology: v6e:2x2x1
jax: 0.10.0
libtpu: 0.0.40
codegen_flags: <defaults>
</compile_context>

<pallas_src>
import functools

import jax
import jax.numpy as jnp
from jax import lax
from jax.experimental import pallas as pl
from jax.experimental.pallas import tpu as pltpu


# --------------------------------------------------------------------------- helpers
def _round_up(a, b):
    return -(-a // b) * b


def _sublane_tile(dtype):
    """Native sublane tile height: 8 for 4-byte, 16 for 2-byte, 32 for 1-byte dtypes."""
    return 8 * max(1, 4 // jnp.dtype(dtype).itemsize)


def _padded_block_bytes(rows, lanes, dtype):
    """VMEM bytes actually occupied by a (rows, lanes) tile of `dtype` (tiling-aware)."""
    it = jnp.dtype(dtype).itemsize
    return (_round_up(max(int(rows), 1), _sublane_tile(dtype))
            * _round_up(max(int(lanes), 1), 128) * it)


def _vmem_capacity_bytes():
    """Physical per-core VMEM; conservative 64 MiB (v7x) fallback if the query fails."""
    try:
        info = pltpu.get_tpu_info()
        for attr in ("vmem_capacity_bytes", "vmem_bytes", "vmem_size_bytes"):
            v = getattr(info, attr, None)
            if v:
                return int(v)
    except Exception:
        pass
    return 64 * 1024 * 1024


def _pick_fold(C, HW, pad, min_lanes=512):
    """Smallest channel-group size g (divisor of C, > pad) making g*HW lane-dense."""
    for g in range(1, C + 1):
        if C % g == 0 and g > pad and g * HW >= min_lanes:
            return g
    return C if C > pad else None


def _pick_c_tile(C, HW, dtype, pad, align, block_target, force_split):
    """Channel tile (divisor of C, multiple of `align`) or C for the full-C path."""
    can_tile = (C % align == 0) and (C >= 2 * align) and (pad <= align)
    if not can_tile:
        return C
    cands = [d for d in range(align, C, align) if C % d == 0]
    if not cands:
        return C
    if not force_split and _padded_block_bytes(C, HW, dtype) <= block_target:
        return C
    fitting = [d for d in cands if _padded_block_bytes(d, HW, dtype) <= block_target]
    return max(fitting) if fitting else min(cands)


# --------------------------------------------------------------------------- kernels
def _eca_kernel_full(x_ref, w_ref, b_ref, o_ref, *, kernel_size):
    """Single block covers all C channels of one batch element. x_ref: (1, C, HW)."""
    x = x_ref[...]                                        # native dtype
    C = x.shape[1]
    pad = (kernel_size - 1) // 2
    m = jnp.mean(x, axis=-1, dtype=jnp.float32)           # (1, C), f32 accumulation
    mp = jnp.pad(m, ((0, 0), (pad, pad))) if pad > 0 else m
    y = jnp.zeros((1, C), jnp.float32) + b_ref[0]
    for k in range(kernel_size):                          # tiny static unrolled loop
        y = y + w_ref[k] * mp[:, k:k + C]
    gate = jax.nn.sigmoid(y)                              # f32 gate, as the reference
    o_ref[...] = (x * gate[:, :, None]).astype(o_ref.dtype)


def _eca_kernel_tiled(*refs, kernel_size, c_tile, halo):
    """Channel-tiled. x_ref: (1, c_tile, HW); halo refs (only if pad>0): (1, halo, HW)."""
    pad = (kernel_size - 1) // 2
    if pad > 0:
        x_ref, lhalo_ref, rhalo_ref, w_ref, b_ref, o_ref = refs
    else:
        x_ref, w_ref, b_ref, o_ref = refs

    ct = pl.program_id(1)
    n_ct = pl.num_programs(1)
    x = x_ref[...]
    m = jnp.mean(x, axis=-1, dtype=jnp.float32)           # (1, c_tile)

    if pad > 0:
        # Means of the halo blocks just left/right of this tile.  Edge tiles have no
        # real neighbor (their index map clamps) so mask that contribution to zero,
        # matching Conv1d's zero padding at the ends of the channel axis.
        lm = jnp.mean(lhalo_ref[...], axis=-1, dtype=jnp.float32)     # (1, halo)
        rm = jnp.mean(rhalo_ref[...], axis=-1, dtype=jnp.float32)     # (1, halo)
        lscale = jnp.where(ct > 0, 1.0, 0.0)
        rscale = jnp.where(ct < n_ct - 1, 1.0, 0.0)
        left = lm[:, halo - pad:] * lscale                             # (1, pad)
        right = rm[:, :pad] * rscale                                   # (1, pad)
        ext = jnp.pad(m, ((0, 0), (pad, pad)))                         # (1, c_tile+2p)
        ext = ext + jnp.pad(left, ((0, 0), (0, c_tile + pad)))
        ext = ext + jnp.pad(right, ((0, 0), (c_tile + pad, 0)))
    else:
        ext = m

    y = jnp.zeros((1, c_tile), jnp.float32) + b_ref[0]
    for k in range(kernel_size):
        y = y + w_ref[k] * ext[:, k:k + c_tile]
    gate = jax.nn.sigmoid(y)                              # (1, c_tile) f32
    o_ref[...] = (x * gate[:, :, None]).astype(o_ref.dtype)


def _eca_kernel_folded(*refs, kernel_size, hw):
    """Lane-folded small-spatial path. x_ref: (1, R, L) with R=C//g, L=g*HW."""
    pad = (kernel_size - 1) // 2
    if pad > 0:
        x_ref, s_ref, e_ref, u_ref, d_ref, w_ref, b_ref, o_ref = refs
    else:
        x_ref, s_ref, e_ref, w_ref, b_ref, o_ref = refs

    hi = lax.Precision.HIGHEST
    x = x_ref[0]                                          # (R, L) native dtype
    # Per-channel means via a 0/1 segment matrix (keeps lanes dense; f32 accumulate).
    m = jnp.dot(x, s_ref[...], preferred_element_type=jnp.float32,
                precision=hi) * (1.0 / hw)                # (R, g)
    g = m.shape[1]

    if pad > 0:
        # Row-shifted means (zero row at the top/bottom edge == Conv1d zero padding).
        up = jnp.dot(u_ref[...], m, preferred_element_type=jnp.float32, precision=hi)
        dn = jnp.dot(d_ref[...], m, preferred_element_type=jnp.float32, precision=hi)

    y = jnp.zeros_like(m) + b_ref[0]
    for k in range(kernel_size):                          # tiny static unrolled loop
        d = k - pad
        if d == 0:
            sh = m
        elif d > 0:   # channel c+d: same row shifted left; tail wraps into next row
            sh = (jnp.pad(m[:, d:], ((0, 0), (0, d))) +
                  jnp.pad(dn[:, :d], ((0, 0), (g - d, 0))))
        else:         # channel c+d (d<0): head wraps into previous row
            sh = (jnp.pad(up[:, g + d:], ((0, 0), (0, g + d))) +
                  jnp.pad(m[:, :g + d], ((0, 0), (-d, 0))))
        y = y + w_ref[k] * sh

    gate = jax.nn.sigmoid(y)                              # (R, g) f32
    # Expand the gate back to the folded layout: gate_x[r, l] = gate[r, l // HW].
    gate_x = jnp.dot(gate, e_ref[...], preferred_element_type=jnp.float32,
                     precision=hi)                        # (R, L)
    o_ref[0] = (x * gate_x).astype(o_ref.dtype)


# --------------------------------------------------------------------------- wrapper
def eca_attention(x, conv_weight, conv_bias, *, kernel_size=3, c_tile=None,
                  block_target_bytes=None, fold_small_spatial=True):
    """x: (B, C, H, W); conv_weight: (1, 1, K); conv_bias: (1,)."""
    B, C, H, W = x.shape
    HW = H * W
    K = int(kernel_size)
    pad = (K - 1) // 2
    dtype = x.dtype
    itemsize = jnp.dtype(dtype).itemsize
    align = _sublane_tile(dtype)

    # Per-generation sizing: scoped VMEM ~80% of physical; block target ~limit/5 so
    # 2x(in) + 2x(out) + halos stay comfortably inside the limit.
    cap = _vmem_capacity_bytes()
    vmem_limit = int(min(cap * 4 // 5, cap - 8 * 1024 * 1024))
    if block_target_bytes is None:
        block_target_bytes = max(vmem_limit // 5, 2 * 1024 * 1024)

    w = conv_weight.reshape(K).astype(jnp.float32)
    b = conv_bias.reshape(1).astype(jnp.float32)
    cost = pl.CostEstimate(flops=int(3 * B * C * HW),
                           transcendentals=int(B * C),
                           bytes_accessed=int(2 * B * C * HW * itemsize))

    def cparams(sem):
        return pltpu.CompilerParams(dimension_semantics=sem,
                                    vmem_limit_bytes=vmem_limit)

    # ---- small-spatial path: fold channel groups into the lane axis ---------------
    if fold_small_spatial and HW < 128 and c_tile is None:
        g = _pick_fold(C, HW, pad)
        if g is not None:
            R, L = C // g, g * HW
            blk = _padded_block_bytes(R, L, dtype)
            aux = 4 * (L * g * 4)           # S + E constants, double-buffered
            if blk <= block_target_bytes and 4 * blk + aux <= vmem_limit:
                xr = x.reshape(B, R, L)     # free reshape: lane axis = g*HW (dense)
                lane = jnp.arange(L) // HW
                S = (lane[:, None] == jnp.arange(g)[None, :]).astype(jnp.float32)
                E = (lane[None, :] == jnp.arange(g)[:, None]).astype(jnp.float32)
                in_specs = [pl.BlockSpec((1, R, L), lambda b_: (b_, 0, 0)),
                            pl.BlockSpec((L, g), lambda b_: (0, 0)),
                            pl.BlockSpec((g, L), lambda b_: (0, 0))]
                args = [xr, S, E]
                if pad > 0:
                    r_idx = jnp.arange(R)
                    U = (r_idx[:, None] - 1 == r_idx[None, :]).astype(jnp.float32)
                    D = (r_idx[:, None] + 1 == r_idx[None, :]).astype(jnp.float32)
                    in_specs += [pl.BlockSpec((R, R), lambda b_: (0, 0)),
                                 pl.BlockSpec((R, R), lambda b_: (0, 0))]
                    args += [U, D]
                in_specs += [pl.BlockSpec(memory_space=pltpu.SMEM),
                             pl.BlockSpec(memory_space=pltpu.SMEM)]
                args += [w, b]
                kern = functools.partial(_eca_kernel_folded, kernel_size=K, hw=HW)
                out = pl.pallas_call(
                    kern,
                    out_shape=jax.ShapeDtypeStruct((B, R, L), dtype),
                    grid=(B,),
                    in_specs=in_specs,
                    out_specs=pl.BlockSpec((1, R, L), lambda b_: (b_, 0, 0)),
                    compiler_params=cparams(("parallel",)),
                    cost_estimate=cost,
                )(*args)
                return out.reshape(B, C, H, W)

    # ---- general path: lane axis = H*W, channel axis tiled when useful ------------
    xf = x.reshape(B, C, HW)
    Cw = C
    if c_tile is None:
        c_tile = _pick_c_tile(C, HW, dtype, pad, align, block_target_bytes, B < 2)
        # Fallback: a monolithic full-C block would over-commit VMEM but C is not
        # tileable -> zero-pad channels (zero channels have zero means, which matches
        # Conv1d's zero padding, and the padded outputs are sliced away).
        if (c_tile == C and pad <= align
                and _padded_block_bytes(C, HW, dtype) > block_target_bytes
                and (C % align != 0 or C < 2 * align)):
            Cw = max(2 * align, _round_up(C, align))
            xf = jnp.pad(xf, ((0, 0), (0, Cw - C), (0, 0)))
            c_tile = _pick_c_tile(Cw, HW, dtype, pad, align, block_target_bytes, B < 2)
        # TODO(synk): very large kernel_size (pad > sublane tile) with untileable C
        # still uses one full-C block per batch element.
    else:
        c_tile = int(c_tile)
        if c_tile != Cw:
            assert Cw % c_tile == 0 and c_tile % align == 0 and pad <= align

    if c_tile == Cw:
        kern = functools.partial(_eca_kernel_full, kernel_size=K)
        out = pl.pallas_call(
            kern,
            out_shape=jax.ShapeDtypeStruct((B, Cw, HW), dtype),
            grid=(B,),
            in_specs=[pl.BlockSpec((1, Cw, HW), lambda b_: (b_, 0, 0)),
                      pl.BlockSpec(memory_space=pltpu.SMEM),
                      pl.BlockSpec(memory_space=pltpu.SMEM)],
            out_specs=pl.BlockSpec((1, Cw, HW), lambda b_: (b_, 0, 0)),
            compiler_params=cparams(("parallel",)),
            cost_estimate=cost,
        )(xf, w, b)
    else:
        nb = c_tile // align             # tile width in halo(align)-row blocks
        n_blk = Cw // align
        kern = functools.partial(_eca_kernel_tiled, kernel_size=K,
                                 c_tile=c_tile, halo=align)
        in_specs = [pl.BlockSpec((1, c_tile, HW), lambda b_, c_: (b_, c_, 0))]
        args = [xf]
        if pad > 0:
            # Native-sublane-tile halo blocks immediately left / right of the tile
            # (clamped at the channel-array edges; masked to zero in the kernel).
            in_specs += [
                pl.BlockSpec((1, align, HW),
                             lambda b_, c_: (b_, jnp.maximum(c_ * nb - 1, 0), 0)),
                pl.BlockSpec((1, align, HW),
                             lambda b_, c_: (b_, jnp.minimum((c_ + 1) * nb,
                                                             n_blk - 1), 0)),
            ]
            args += [xf, xf]
        in_specs += [pl.BlockSpec(memory_space=pltpu.SMEM),
                     pl.BlockSpec(memory_space=pltpu.SMEM)]
        args += [w, b]
        out = pl.pallas_call(
            kern,
            out_shape=jax.ShapeDtypeStruct((B, Cw, HW), dtype),
            grid=(B, Cw // c_tile),
            in_specs=in_specs,
            out_specs=pl.BlockSpec((1, c_tile, HW), lambda b_, c_: (b_, c_, 0)),
            compiler_params=cparams(("parallel", "parallel")),
            cost_estimate=cost,
        )(*args)

    if Cw != C:
        out = out[:, :C, :]
    return out.reshape(B, C, H, W)


def eca_attention_ref(x, conv_weight, conv_bias, *, kernel_size=3):
    """Pure-JAX reference mirroring the PyTorch forward."""
    xf = x.astype(jnp.float32)
    m = jnp.mean(xf, axis=(2, 3))                        # (B, C)
    pad = (kernel_size - 1) // 2
    mp = jnp.pad(m, ((0, 0), (pad, pad)))
    w = conv_weight.reshape(kernel_size)
    C = x.shape[1]
    y = conv_bias.reshape(1, 1) + sum(
        w[k] * mp[:, k:k + C] for k in range(kernel_size))
    gate = jax.nn.sigmoid(y)
    return (xf * gate[:, :, None, None]).astype(x.dtype)


if __name__ == "__main__":
    key = jax.random.PRNGKey(0)
    kx1, kx2, kx3, kx4, kw3, kb3, kw5, kb5 = jax.random.split(key, 8)

    def make_conv(kk, kwk, kbk):
        # PyTorch-style Conv1d(1, 1, K) init: uniform(-1/sqrt(fan_in), 1/sqrt(fan_in)).
        bound = 1.0 / (kk ** 0.5)
        wgt = jax.random.uniform(kwk, (1, 1, kk), jnp.float32, -bound, bound)
        bias = jax.random.uniform(kbk, (1,), jnp.float32, -bound, bound)
        return wgt, bias

    w3, b3 = make_conv(3, kw3, kb3)
    w5, b5 = make_conv(5, kw5, kb5)

    def check(name, out, ref):
        assert out.shape == ref.shape, f"shape mismatch: {name}"
        assert jnp.allclose(out, ref, atol=1e-5, rtol=1e-5), f"mismatch: {name}"

    # 1) Module-sized input: C=4 (below the sublane tile) -> full-C path, grid over B.
    x1 = jax.random.normal(kx1, (2, 4, 16, 16), jnp.float32)
    o1 = jax.block_until_ready(eca_attention(x1, w3, b3, kernel_size=3))
    check("full", o1, eca_attention_ref(x1, w3, b3, kernel_size=3))

    # 2) Channel-tiled path with halo blocks (C=16 split into c_tile=8).
    x2 = jax.random.normal(kx2, (2, 16, 8, 16), jnp.float32)
    o2 = jax.block_until_ready(eca_attention(x2, w3, b3, kernel_size=3, c_tile=8))
    check("tiled", o2, eca_attention_ref(x2, w3, b3, kernel_size=3))

    # 3) Small spatial map (7x7) -> lane-folded path; K=5 exercises cross-row taps.
    x3 = jax.random.normal(kx3, (2, 32, 7, 7), jnp.float32)
    o3 = jax.block_until_ready(eca_attention(x3, w5, b5, kernel_size=5))
    check("folded", o3, eca_attention_ref(x3, w5, b5, kernel_size=5))

    # 4) B == 1 forces channel splitting so both v7x TensorCores get work.
    x4 = jax.random.normal(kx4, (1, 32, 16, 16), jnp.float32)
    o4 = jax.block_until_ready(eca_attention(x4, w3, b3, kernel_size=3))
    check("b1-split", o4, eca_attention_ref(x4, w3, b3, kernel_size=3))

    print("KERNEL_OK")
</pallas_src>

<mosaic_0001>
module attributes {stable_mosaic.version = 11 : i64} {
  func.func @_eca_kernel_full(%arg0: i32, %arg1: memref<1x4x256xf32, #tpu.memory_space<vmem>>, %arg2: memref<3xf32, #tpu.memory_space<smem>>, %arg3: memref<1xf32, #tpu.memory_space<smem>>, %arg4: memref<1x4x256xf32, #tpu.memory_space<vmem>>) attributes {dimension_semantics = [#tpu.dimension_semantics<parallel>], iteration_bounds = array<i64: 2>, scalar_prefetch = 0 : i64, scratch_operands = 0 : i64, tpu.core_type = #tpu.core_type<tc>, window_params = [{transform_indices = @transform_0, window_bounds = array<i64: 1, 4, 256>}, {transform_indices = @transform_1, window_bounds = array<i64: 3>}, {transform_indices = @transform_2, window_bounds = array<i64: 1>}, {transform_indices = @transform_3, window_bounds = array<i64: 1, 4, 256>}]} {
    %c0 = arith.constant 0 : index
    %c0_0 = arith.constant 0 : index
    %c0_1 = arith.constant 0 : index
    %0 = vector.load %arg1[%c0, %c0_0, %c0_1] : memref<1x4x256xf32, #tpu.memory_space<vmem>>, vector<1x4x256xf32>
    %cst = arith.constant dense<0.000000e+00> : vector<1x4xf32>
    %1 = vector.multi_reduction <add>, %0, %cst [2] : vector<1x4x256xf32> to vector<1x4xf32>
    %cst_2 = arith.constant 2.560000e+02 : f32
    %2 = vector.broadcast %cst_2 : f32 to vector<1x4xf32>
    %3 = arith.divf %1, %2 : vector<1x4xf32>
    %c0_i32 = arith.constant 0 : i32
    %4 = arith.sitofp %c0_i32 : i32 to f32
    %5 = vector.broadcast %4 : f32 to vector<1x1xf32>
    %6 = tpu.concatenate %5, %3 in 1 : vector<1x1xf32>, vector<1x4xf32> -> vector<1x5xf32>
    %7 = vector.broadcast %4 : f32 to vector<1x1xf32>
    %8 = tpu.concatenate %6, %7 in 1 : vector<1x5xf32>, vector<1x1xf32> -> vector<1x6xf32>
    %cst_3 = arith.constant 0.000000e+00 : f32
    %9 = vector.broadcast %cst_3 : f32 to vector<1x4xf32>
    %c0_4 = arith.constant 0 : index
    %10 = memref.load %arg3[%c0_4] : memref<1xf32, #tpu.memory_space<smem>>
    %11 = vector.broadcast %10 : f32 to vector<1x4xf32>
    %12 = arith.addf %9, %11 : vector<1x4xf32>
    %c0_5 = arith.constant 0 : index
    %13 = memref.load %arg2[%c0_5] : memref<3xf32, #tpu.memory_space<smem>>
    %14 = vector.extract_strided_slice %8 {offsets = [0, 0], sizes = [1, 4], strides = [1, 1]} : vector<1x6xf32> to vector<1x4xf32>
    %15 = vector.broadcast %13 : f32 to vector<1x4xf32>
    %16 = arith.mulf %15, %14 : vector<1x4xf32>
    %17 = arith.addf %12, %16 : vector<1x4xf32>
    %c1 = arith.constant 1 : index
    %18 = memref.load %arg2[%c1] : memref<3xf32, #tpu.memory_space<smem>>
    %19 = vector.extract_strided_slice %8 {offsets = [0, 1], sizes = [1, 4], strides = [1, 1]} : vector<1x6xf32> to vector<1x4xf32>
    %20 = vector.broadcast %18 : f32 to vector<1x4xf32>
    %21 = arith.mulf %20, %19 : vector<1x4xf32>
    %22 = arith.addf %17, %21 : vector<1x4xf32>
    %c2 = arith.constant 2 : index
    %23 = memref.load %arg2[%c2] : memref<3xf32, #tpu.memory_space<smem>>
    %24 = vector.extract_strided_slice %8 {offsets = [0, 2], sizes = [1, 4], strides = [1, 1]} : vector<1x6xf32> to vector<1x4xf32>
    %25 = vector.broadcast %23 : f32 to vector<1x4xf32>
    %26 = arith.mulf %25, %24 : vector<1x4xf32>
    %27 = arith.addf %22, %26 : vector<1x4xf32>
    %28 = arith.negf %27 : vector<1x4xf32>
    %29 = math.exp %28 : vector<1x4xf32>
    %cst_6 = arith.constant 1.000000e+00 : f32
    %30 = vector.broadcast %cst_6 : f32 to vector<1x4xf32>
    %31 = arith.addf %30, %29 : vector<1x4xf32>
    %32 = arith.divf %30, %31 : vector<1x4xf32>
    %33 = vector.shape_cast %32 : vector<1x4xf32> to vector<1x4x1xf32>
    %34 = vector.broadcast %33 : vector<1x4x1xf32> to vector<1x4x256xf32>
    %35 = arith.mulf %0, %34 : vector<1x4x256xf32>
    %c0_7 = arith.constant 0 : index
    %c0_8 = arith.constant 0 : index
    %c0_9 = arith.constant 0 : index
    %36 = vector.load %arg4[%c0_7, %c0_8, %c0_9] : memref<1x4x256xf32, #tpu.memory_space<vmem>>, vector<1x4x256xf32>
    tpu.vector_store %arg4[%c0_7, %c0_8, %c0_9], %35 {strides = array<i32>} : memref<1x4x256xf32, #tpu.memory_space<vmem>>, vector<1x4x256xf32>,
    return
  }
  func.func @transform_0(%arg0: i32) -> (i32, i32, i32) {
    %c0_i32 = arith.constant 0 : i32
    %c0_i32_0 = arith.constant 0 : i32
    %c0_i32_1 = arith.constant 0 : i32
    return %arg0, %c0_i32, %c0_i32_0 : i32, i32, i32
  }
  func.func @transform_1(%arg0: i32) -> i32 {
    %c0_i32 = arith.constant 0 : i32
    %c0_i32_0 = arith.constant 0 : i32
    return %c0_i32 : i32
  }
  func.func @transform_2(%arg0: i32) -> i32 {
    %c0_i32 = arith.constant 0 : i32
    %c0_i32_0 = arith.constant 0 : i32
    return %c0_i32 : i32
  }
  func.func @transform_3(%arg0: i32) -> (i32, i32, i32) {
    %c0_i32 = arith.constant 0 : i32
    %c0_i32_0 = arith.constant 0 : i32
    %c0_i32_1 = arith.constant 0 : i32
    return %arg0, %c0_i32, %c0_i32_0 : i32, i32, i32
  }
}

</mosaic_0001>

<llo_original>
// kernel: tpu_custom_call.1
$region0: #{tpu_custom_call.1}
  #allocation0 [shape = 'u32[]', space=smem, size = 0x4, offset = 0x4, fixed_abs, tag = 'smem constant byte address 0x4 - core index']
  #allocation1 [shape = 'u32[144,128]{1,0:T(1,128)}', space=vmem, size = 0x12000, scoped, tag = 'internal scratch']
  #allocation2 [shape = 'f32[1]{0:T(128)S(6)}', space=smem, size = 0x200, scoped, tag = 'scoped memory for tpu_custom_call.1']
  %s0 = inlined_call_operand.hbm [shape: f32[2,4,256], index: 0, kind: input, shape index: {}]
  %s1 = inlined_call_operand.vmem [shape: f32[3], index: 1, kind: input, shape index: {}]
  %s2 = inlined_call_operand.<no memory space> [shape: f32[1], index: 2, kind: input, shape index: {}]
  %s3 = inlined_call_operand.hbm [shape: f32[2,4,256], index: 3, kind: output, shape index: {}]
  %s4 = sld [smem:[#allocation0]]
  $region53: #{tpu_custom_call.1} parent=0
    _
  %s6 = ssub.s32 1, %s4
  %s7 = scalar_select 0, %s6, %s4
  %8 = sst [smem:[#allocation2]] %s2
  $region1: #{tpu_custom_call.1} parent=0
    #allocation3 [shape = 'u8[8192]{0}', space=vmem, size = 0x2000, scoped, tag = 'input window, operand 0']
    #allocation4 [shape = 's32[2]{0}', space=sflag, size = 0x8, scoped, tag = 'scoped memory for tpu_custom_call.1']
    #allocation5 [shape = 's32[2]{0}', space=sflag, size = 0x8, scoped, tag = 'scoped memory for tpu_custom_call.1']
    #allocation6 [shape = 's32[2]{0}', space=sflag, size = 0x8, scoped, tag = 'scoped memory for tpu_custom_call.1']
    #allocation7 [shape = 'u8[512]{0}', space=smem, size = 0x200, scoped, tag = 'input window, operand 1, single buffered']
    #allocation8 [shape = 'u8[8192]{0}', space=vmem, size = 0x2000, scoped, tag = 'output window, operand 0']
    %9 = vsyncpa [#allocation4], 0
    %s10 = scalar_lea.sflag [#allocation4], 1
    %11 = vsyncpa %s10, 0
    %12 = vsyncpa [#allocation6], 0
    %13 = vsyncpa [#allocation5], 0
    %s14 = scalar_lea.sflag [#allocation5], 1
    %15 = vsyncpa %s14, 0
    loop: start=0, step=1, limit=4
    $region2: #{tpu_custom_call.1} parent=1 // loop_pre_header
      _
    $region3: #{tpu_custom_call.1} parent=1 // loop_header
      %s17 = sphi 0, %s21
      %p18 = scmp.ge.s32.totalorder %s17, 4
      %s27 = sphi 0, %s29
      %s30 = sphi 0, %s27
      %s31 = sphi 0, %s30
      %s47 = sphi 0, %s31
      %s51 = sphi 0, %s51
      %s53 = sphi 0, %s51
      %s54 = sphi 0, %s53
      %s68 = sphi 0, %s54
      %s72 = sphi 0, %s72
      %s74 = sphi 0, %s72
      %s75 = sphi 0, %s74
      %s89 = sphi 0, %s75
      %s95 = sphi 0, %s97
      %s98 = sphi 0, %s95
      %s99 = sphi 0, %s98
      %s115 = sphi 0, %s99
    $region4: #{tpu_custom_call.1} parent=1 // loop_header_branch
      %20 = sbr.rel (%p18) target = $region8
    $region5: #{tpu_custom_call.1} parent=1 // loop_body
      %s22 = ssub.s32 %s17, 1
      %s23 = ssub.s32 %s17, 2
      %s24 = sadd.s32 %s17, 1
      %s25 = ssub.s32 %s17, %s24
      %p26 = scmp.eq.s32.totalorder %s25, 0
      %s28 = sadd.s32 %s27, 1
      %s29 = scalar_select %p26, %s27, %s28
      %p32 = pneg %p26
      %p33 = scmp.eq.s32.totalorder %s17, 1
      %p34 = por %p32, %p33
      %p35 = scmp.ne.s32.totalorder %s27, %s30
      %p36 = scmp.eq.s32.totalorder %s17, 0
      %p37 = por %p35, %p36
      %p38 = scmp.ne.s32.totalorder %s27, %s30
      %p39 = scmp.eq.s32.totalorder %s22, 1
      %p40 = por %p38, %p39
      %p41 = scmp.ne.s32.totalorder %s30, %s31
      %p42 = scmp.eq.s32.totalorder %s22, 0
      %p43 = por %p41, %p42
      %p44 = scmp.ne.s32.totalorder %s30, %s31
      %p45 = scmp.eq.s32.totalorder %s23, 1
      %p46 = por %p44, %p45
      %p48 = scmp.ne.s32.totalorder %s31, %s47
      %p49 = scmp.eq.s32.totalorder %s23, 0
      %p50 = por %p48, %p49
      %s52 = sadd.s32 %s51, 1
      %p55 = scmp.eq.s32.totalorder %s17, 1
      %p56 = scmp.ne.s32.totalorder %s51, %s53
      %p57 = scmp.eq.s32.totalorder %s17, 0
      %p58 = por %p56, %p57
      %p59 = scmp.ne.s32.totalorder %s51, %s53
      %p60 = scmp.eq.s32.totalorder %s22, 1
      %p61 = por %p59, %p60
      %p62 = scmp.ne.s32.totalorder %s53, %s54
      %p63 = scmp.eq.s32.totalorder %s22, 0
      %p64 = por %p62, %p63
      %p65 = scmp.ne.s32.totalorder %s53, %s54
      %p66 = scmp.eq.s32.totalorder %s23, 1
      %p67 = por %p65, %p66
      %p69 = scmp.ne.s32.totalorder %s54, %s68
      %p70 = scmp.eq.s32.totalorder %s23, 0
      %p71 = por %p69, %p70
      %s73 = sadd.s32 %s72, 1
      %p76 = scmp.eq.s32.totalorder %s17, 1
      %p77 = scmp.ne.s32.totalorder %s72, %s74
      %p78 = scmp.eq.s32.totalorder %s17, 0
      %p79 = por %p77, %p78
      %p80 = scmp.ne.s32.totalorder %s72, %s74
      %p81 = scmp.eq.s32.totalorder %s22, 1
      %p82 = por %p80, %p81
      %p83 = scmp.ne.s32.totalorder %s74, %s75
      %p84 = scmp.eq.s32.totalorder %s22, 0
      %p85 = por %p83, %p84
      %p86 = scmp.ne.s32.totalorder %s74, %s75
      %p87 = scmp.eq.s32.totalorder %s23, 1
      %p88 = por %p86, %p87
      %p90 = scmp.ne.s32.totalorder %s75, %s89
      %p91 = scmp.eq.s32.totalorder %s23, 0
      %p92 = por %p90, %p91
      %s93 = ssub.s32 %s17, %s24
      %p94 = scmp.eq.s32.totalorder %s93, 0
      %s96 = sadd.s32 %s95, 1
      %s97 = scalar_select %p94, %s95, %s96
      %p100 = pneg %p94
      %p101 = scmp.eq.s32.totalorder %s17, 1
      %p102 = por %p100, %p101
      %p103 = scmp.ne.s32.totalorder %s95, %s98
      %p104 = scmp.eq.s32.totalorder %s17, 0
      %p105 = por %p103, %p104
      %p106 = scmp.ne.s32.totalorder %s95, %s98
      %p107 = scmp.eq.s32.totalorder %s22, 1
      %p108 = por %p106, %p107
      %p109 = scmp.ne.s32.totalorder %s98, %s99
      %p110 = scmp.eq.s32.totalorder %s22, 0
      %p111 = por %p109, %p110
      %p112 = scmp.ne.s32.totalorder %s98, %s99
      %p113 = scmp.eq.s32.totalorder %s23, 1
      %p114 = por %p112, %p113
      %p116 = scmp.ne.s32.totalorder %s99, %s115
      %p117 = scmp.eq.s32.totalorder %s23, 0
      %p118 = por %p116, %p117
      %p119 = scmp.le.s32.totalorder 1, %s17
      %p120 = scmp.lt.s32.totalorder %s17, 3
      %p121 = pnand %p119, %p120
      %p122 = pneg %p121
      // Predicated region
      $region9: #{tpu_custom_call.1} parent=5 // pred_check
        _
      $region10: #{tpu_custom_call.1} parent=5 // pred_check_branch
        %124 = sbr.rel (%p121) target = $region12
      $region11: #{tpu_custom_call.1} parent=5 // pred_region
        %s125 = ssub.s32 %s17, 1
        // Predicated region
        $region13: #{tpu_custom_call.1} parent=11 // pred_check
          %p126 = pneg %p64
        $region14: #{tpu_custom_call.1} parent=11 // pred_check_branch
          %128 = sbr.rel (%p126) target = $region16
        $region15: #{tpu_custom_call.1} parent=11 // pred_region
          %s130 = ssub.s32 16, 16
          %131 = vsyncadd [#allocation6], %s130
          %s133 = sshll.u32 %s1, 4
          %s134 = int_to_ptr.vmem [resolvable:$true] %s133
          %136 = dma.vmem_to_smem %s134, 16, [#allocation7], [#allocation6]
        $region16: #{tpu_custom_call.1} parent=11 // pred_fallthru
          _
        // Predicated region
        $region17: #{tpu_custom_call.1} parent=11 // pred_check
          %p137 = pneg %p85
        $region18: #{tpu_custom_call.1} parent=11 // pred_check_branch
          %139 = sbr.rel (%p137) target = $region20
        $region19: #{tpu_custom_call.1} parent=11 // pred_region
          _
        $region20: #{tpu_custom_call.1} parent=11 // pred_fallthru
          _
      $region12: #{tpu_custom_call.1} parent=5 // pred_fallthru
        _
      %p140 = scmp.lt.s32.totalorder %s17, 2
      // Predicated region
      $region21: #{tpu_custom_call.1} parent=5 // pred_check
        %p141 = pneg %p140
      $region22: #{tpu_custom_call.1} parent=5 // pred_check_branch
        %143 = sbr.rel (%p141) target = $region24
      $region23: #{tpu_custom_call.1} parent=5 // pred_region
        // Predicated region
        $region25: #{tpu_custom_call.1} parent=23 // pred_check
          %p144 = pneg %p37
        $region26: #{tpu_custom_call.1} parent=23 // pred_check_branch
          %146 = sbr.rel (%p144) target = $region28
        $region27: #{tpu_custom_call.1} parent=23 // pred_region
          %s147 = sand.u32 %s27, 1
          %s148 = scalar_lea.sflag [#allocation4], %s147
          %s149 = sand.u32 %s27, 1
          %s150 = smul.addr %s149, 8
          %s151 = scalar_lea.vmem [#allocation3], %s150
          %s153 = ssub.s32 128, 128
          %154 = vsyncadd %s148, %s153
          %s155 = smul.addr %s17, 2
          %s156 = smul.addr %s155, 64
          %s157 = scalar_lea.hbm %s0, %s156
          %s159 = sshll.u32 %s151, 4
          %s160 = int_to_ptr.vmem [resolvable:$true] %s159
          %162 = dma.hbm_to_vmem [thread:$0]  %s157, 128, %s160, %s148
        $region28: #{tpu_custom_call.1} parent=23 // pred_fallthru
          _
      $region24: #{tpu_custom_call.1} parent=5 // pred_fallthru
        _
      %p163 = scmp.le.s32.totalorder 1, %s17
      %p164 = scmp.lt.s32.totalorder %s17, 3
      %p165 = pnand %p163, %p164
      %p166 = pneg %p165
      // Predicated region
      $region29: #{tpu_custom_call.1} parent=5 // pred_check
        _
      $region30: #{tpu_custom_call.1} parent=5 // pred_check_branch
        %168 = sbr.rel (%p165) target = $region32
      $region31: #{tpu_custom_call.1} parent=5 // pred_region
        %s169 = ssub.s32 %s17, 1
        %s170 = sand.u32 %s30, 1
        %s171 = scalar_lea.sflag [#allocation4], %s170
        %s172 = sand.u32 %s30, 1
        %s173 = smul.addr %s172, 8
        %s174 = scalar_lea.vmem [#allocation3], %s173
        // Predicated region
        $region33: #{tpu_custom_call.1} parent=31 // pred_check
          %p175 = pneg %p43
        $region34: #{tpu_custom_call.1} parent=31 // pred_check_branch
          %177 = sbr.rel (%p175) target = $region36
        $region35: #{tpu_custom_call.1} parent=31 // pred_region
          %178 = dma.done %s171, 128
        $region36: #{tpu_custom_call.1} parent=31 // pred_fallthru
          _
        // Predicated region
        $region37: #{tpu_custom_call.1} parent=31 // pred_check
          %p179 = pneg %p64
        $region38: #{tpu_custom_call.1} parent=31 // pred_check_branch
          %181 = sbr.rel (%p179) target = $region40
        $region39: #{tpu_custom_call.1} parent=31 // pred_region
          %182 = dma.done [#allocation6], 16
        $region40: #{tpu_custom_call.1} parent=31 // pred_fallthru
          _
        %183 = sfence
        %s184 = sand.u32 %s30, 1
        %s185 = scalar_lea.sflag [#allocation4], %s184
        %s186 = sand.u32 %s30, 1
        %s187 = smul.addr %s186, 8
        %s188 = scalar_lea.vmem [#allocation3], %s187
        %p189 = pneg %p43
        %p190 = pneg %p40
        %p191 = pneg %p64
        %p192 = pneg %p61
        %p193 = pneg %p85
        %p194 = pneg %p82
        %p195 = pneg %p111
        %p196 = pneg %p108
        %s197 = sand.u32 %s98, 1
        %s198 = scalar_lea.sflag [#allocation5], %s197
        %s199 = sand.u32 %s98, 1
        %s200 = smul.addr %s199, 8
        %s201 = scalar_lea.vmem [#allocation8], %s200
        %v202 = vld [vmem:[%s174] sm:$0xff]
        %v204 = vcombine.high %v202, %v202
        %vm206 = vcmask 1043456
        %v207 = vsel %vm206, %v202, 0.0
        %v208 = vsel %vm206, %v204, 0.0
        %v209 = vadd.f32 %v207, %v208
        %210 = vadd.xlane.f32.xlu0 %v209
        %v211 = vpop.xlane.xlu0 %210
        %v212 = vrcp.pop 256.0
        %v213 = vmul.f32 %v211, %v212
        %v215 = vlaneseq
        %v216 = vand.u32 %v215, 127
        %v217 = vadd.s32 %v216, 4294967295
        %v218 = vlaneseq
        %v219 = vshrl.u32 %v218, 7
        %v220 = vsub.s32 %v217, %v219
        %v221 = vrot.slane %v213, %v220
        %vm223 = vcmask 7168
        %v224 = vsel %vm223, 0.0, %v221
        %vm225 = vcmask 39936
        %v226 = vsel %vm225, %v224, 0.0
        %s227 = sld [smem:[#allocation2]]
        %v228 = vstv %s227
        %v229 = vadd.f32 %v228, 0.0
        %s230 = sld [smem:[#allocation7]]
        %v231 = vstv %s230
        %v232 = vmul.f32 %v231, %v226
        %v233 = vadd.f32 %v229, %v232
        %s234 = sld [smem:[#allocation7 + $0x1]]
        %v235 = vstv %s234
        %v236 = vmul.f32 %v235, %v226
        %238 = vrot.lane.b32.xlu0 %v236, 127
        %v239 = vpop.permute.xlu0 %238
        %v241 = vadd.f32 %v233, %v239
        %s242 = sld [smem:[#allocation7 + $0x2]]
        %v243 = vstv %s242
        %v244 = vmul.f32 %v243, %v226
        %246 = vrot.lane.b32.xlu0 %v244, 126
        %v247 = vpop.permute.xlu0 %246
        %v249 = vadd.f32 %v241, %v247
        %v250 = vxor.u32 %v249, 2147483648
        %v251 = vmul.f32 %v250, 1.442695
        %v252 = vpow.pop %v251
        %v253 = vadd.f32 %v252, 1.0
        %v254 = vrcp.pop %v253
        %v255 = vmul.f32 1.0, %v254
        %v256 = vlaneseq
        %v257 = vshrl.u32 %v256, 7
        %v258 = vsub.s32 0, %v257
        %v259 = vrot.slane %v255, %v258
        %261 = vbcast.lane.b32.xlu0 %v259, 256
        %v262 = vpop.permute.xlu0 %261
        %v265 = vunpack.c.l.s4 839922192
        %v266 = vunpack.c.0.s8 %v265
        %v267 = vlaneseq
        %v268 = vshrl.u32 %v267, 7
        %v269 = vsub.s32 %v266, %v268
        %v270 = vrot.slane %v262, %v269
        %v272 = vmul.f32 %v202, %v270
        %273 = vst [vmem:[%s201] sm:$0xff] %v272
        %s274 = sand.u32 %s98, 1
        %s275 = scalar_lea.sflag [#allocation5], %s274
        %s276 = sand.u32 %s98, 1
        %s277 = smul.addr %s276, 8
        %s278 = scalar_lea.vmem [#allocation8], %s277
        // Predicated region
        $region41: #{tpu_custom_call.1} parent=31 // pred_check
          %p279 = pneg %p108
        $region42: #{tpu_custom_call.1} parent=31 // pred_check_branch
          %281 = sbr.rel (%p279) target = $region44
        $region43: #{tpu_custom_call.1} parent=31 // pred_region
          %s283 = ssub.s32 128, 128
          %284 = vsyncadd %s275, %s283
          %s285 = smul.addr %s22, 2
          %s286 = smul.addr %s285, 64
          %s287 = scalar_lea.hbm %s3, %s286
          %s289 = sshll.u32 %s278, 4
          %s290 = int_to_ptr.vmem [resolvable:$true] %s289
          %292 = dma.vmem_to_hbm [thread:$0]  %s290, 128, %s287, %s275
        $region44: #{tpu_custom_call.1} parent=31 // pred_fallthru
          _
      $region32: #{tpu_custom_call.1} parent=5 // pred_fallthru
        _
      %p293 = scmp.le.s32.totalorder 2, %s17
      // Predicated region
      $region45: #{tpu_custom_call.1} parent=5 // pred_check
        %p294 = pneg %p293
      $region46: #{tpu_custom_call.1} parent=5 // pred_check_branch
        %296 = sbr.rel (%p294) target = $region48
      $region47: #{tpu_custom_call.1} parent=5 // pred_region
        %s297 = ssub.s32 %s17, 2
        // Predicated region
        $region49: #{tpu_custom_call.1} parent=47 // pred_check
          %p298 = pneg %p114
        $region50: #{tpu_custom_call.1} parent=47 // pred_check_branch
          %300 = sbr.rel (%p298) target = $region52
        $region51: #{tpu_custom_call.1} parent=47 // pred_region
          %s301 = sand.u32 %s99, 1
          %s302 = scalar_lea.sflag [#allocation5], %s301
          %s303 = sand.u32 %s99, 1
          %s304 = smul.addr %s303, 8
          %s305 = scalar_lea.vmem [#allocation8], %s304
          %306 = dma.done %s302, 128
        $region52: #{tpu_custom_call.1} parent=47 // pred_fallthru
          _
      $region48: #{tpu_custom_call.1} parent=5 // pred_fallthru
        _
    $region6: #{tpu_custom_call.1} parent=1 // loop_footer
      %s21 = sadd.s32 1, %s17
    $region7: #{tpu_custom_call.1} parent=1 // loop_footer_branch
      %16 = sbr.rel target = $region3
    $region8: #{tpu_custom_call.1} parent=1 // loop_exit
      _
    %307 = vsyncpa [#allocation4], 1
    %s308 = scalar_lea.sflag [#allocation4], 1
    %309 = vsyncpa %s308, 1
    %310 = vsyncpa [#allocation5], 1
    %s311 = scalar_lea.sflag [#allocation5], 1
    %312 = vsyncpa %s311, 1
    %313 = vsyncpa [#allocation6], 1
    %s314 = scalar_lea.sflag [#allocation6], 1
    %315 = vsyncpa %s314, 1

</llo_original>
